<compile_context>
chip_gen: v6e
topology: v6e:2x2x1
jax: 0.10.0
libtpu: 0.0.40
codegen_flags: <defaults>
</compile_context>

<pallas_src>
import jax
import jax.numpy as jnp
from jax import lax
from jax.experimental import pallas as pl
from jax.experimental.pallas import tpu as pltpu

BN_EPS = 1e-5


# --------------------------------------------------------------------------
# One-time parameter prep (hoisted out of the per-call forward path).
# --------------------------------------------------------------------------
def prepare_single_layer_params(gamma, beta, w_oihw, width):
    """Build (gb_lane, big_w) once.

    gb_lane: (2, W*C) f32  -- row 0 = gamma tiled per lane, row 1 = beta.
    big_w:   (3*W*C, W*G) bf16 -- flat block-Toeplitz 3x3-conv weight; the dx
             taps and the x-direction zero padding are folded in, and the dy
             axis is folded into K so the kernel does a single matmul.
    """
    g, c, kh, kw = w_oihw.shape
    assert (kh, kw) == (3, 3)
    w = width
    wc, wg = w * c, w * g

    gb_lane = jnp.stack(
        [jnp.tile(gamma.astype(jnp.float32), w),
         jnp.tile(beta.astype(jnp.float32), w)], axis=0)          # (2, W*C)

    # big_w[dy*wc + wi*C + ci, wo*G + go] = w_hwio[dy, wi - wo + 1, ci, go]
    # when (wi - wo + 1) in {0,1,2}, else 0 (x-direction zero padding).
    w_hwio = jnp.transpose(w_oihw, (2, 3, 1, 0)).astype(jnp.float32)  # (3,3,C,G)
    wi = jnp.arange(w)[:, None]
    wo = jnp.arange(w)[None, :]
    dx = wi - wo + 1                                              # (W, W)
    valid = ((dx >= 0) & (dx <= 2)).astype(jnp.float32)
    band = w_hwio[:, jnp.clip(dx, 0, 2), :, :]                    # (3, W, W, C, G)
    band = band * valid[None, :, :, None, None]
    big_w = jnp.transpose(band, (0, 1, 3, 2, 4)).reshape(3 * wc, wg)
    return gb_lane, big_w.astype(jnp.bfloat16)


# --------------------------------------------------------------------------
# Kernel
# --------------------------------------------------------------------------
def _make_single_layer_kernel(n, h, w, c, g):
    nh = n * h
    wc = w * c
    inv_count = 1.0 / float(n * h * w)
    w_is_pow2 = (w & (w - 1)) == 0

    def lane_reduce_per_channel(v):
        """(1, W*C) per-lane partials -> per-channel totals broadcast to all lanes."""
        if w_is_pow2:
            # log2(W) lane roll-tree: shifts are multiples of C, so the channel
            # sub-index of each lane is preserved and every lane ends up with
            # the sum over all W positions of its channel.  Pure XLU+VPU, no
            # masks, no scalar scatter-backs.
            shift = c
            while shift < wc:
                v = v + pltpu.roll(v, shift=shift, axis=1)
                shift *= 2
            return v
        # Fallback (non-power-of-2 W): tiny static masked per-channel reduce.
        ch = lax.broadcasted_iota(jnp.int32, (1, wc), 1) % c
        out = jnp.zeros((1, wc), jnp.float32)
        for cc in range(c):
            m = (ch == cc).astype(jnp.float32)
            out = out + jnp.sum(v * m, keepdims=True) * m
        return out

    def kernel(x_ref, gb_ref, w_ref, out_ref):
        # x_ref:   (N*H, W*C)        f32   folded NHWC input
        # gb_ref:  (2, W*C)          f32   [gamma; beta] tiled per lane
        # w_ref:   (3*W*C, W*G)      bf16  fused block-Toeplitz conv weight
        # out_ref: (N*H, W*G)        f32   lane-dense conv output (W*G = 128)
        x = x_ref[...]

        # ---- BatchNorm2d: training-mode batch stats, centered two-pass -------
        mean = lane_reduce_per_channel(
            jnp.sum(x, axis=0, keepdims=True)) * inv_count         # (1, W*C)
        diff = x - mean
        var = lane_reduce_per_channel(
            jnp.sum(diff * diff, axis=0, keepdims=True)) * inv_count
        inv_std = lax.rsqrt(var + BN_EPS)

        scale = inv_std * gb_ref[0:1, :]                           # gamma / std
        act = jnp.maximum(diff * scale + gb_ref[1:2, :], 0.0)      # BN + ReLU, f32

        # ---- 3x3 conv: ONE MXU matmul with K = 3*W*C ------------------------
        # dy row shifts via sublane roll + iota masks (zero pad in h); the dx
        # taps and x-direction padding live inside the Toeplitz weight.
        row = lax.broadcasted_iota(jnp.int32, (nh, 1), 0)
        h_in_img = row % h
        up = jnp.where(h_in_img == 0, 0.0,
                       pltpu.roll(act, shift=1, axis=0))           # row h-1
        down = jnp.where(h_in_img == h - 1, 0.0,
                         pltpu.roll(act, shift=nh - 1, axis=0))    # row h+1

        lhs = jnp.concatenate([up, act, down], axis=1)             # (N*H, 3*W*C)
        out_ref[...] = jnp.dot(lhs.astype(jnp.bfloat16), w_ref[...],
                               preferred_element_type=jnp.float32)

    return kernel


# --------------------------------------------------------------------------
# Forward wrapper (jit this; params come prebuilt from prepare_*).
# --------------------------------------------------------------------------
def single_layer_forward(x_nchw, gb_lane, big_w):
    """x_nchw: (N, C, H, W). Returns (N, C+G, H, W)."""
    n, c, h, w = x_nchw.shape
    nh, wc = n * h, w * c
    wg = big_w.shape[1]
    g = wg // w

    # layout glue: NCHW -> NHWC, folded lane-dense 2-D view
    x_nhwc = jnp.transpose(x_nchw, (0, 2, 3, 1)).astype(jnp.float32)
    x2d = x_nhwc.reshape(nh, wc)

    kernel = _make_single_layer_kernel(n, h, w, c, g)
    conv2d = pl.pallas_call(
        kernel,
        out_shape=jax.ShapeDtypeStruct((nh, wg), jnp.float32),
        in_specs=[
            pl.BlockSpec((nh, wc), lambda: (0, 0)),
            pl.BlockSpec((2, wc), lambda: (0, 0)),
            pl.BlockSpec((3 * wc, wg), lambda: (0, 0)),
        ],
        out_specs=pl.BlockSpec((nh, wg), lambda: (0, 0)),
    )(x2d, gb_lane, big_w)

    # channel concat in NHWC (cheap last-axis concat), single transpose back.
    # In a multi-layer DenseNet block you would stay NHWC end-to-end and write
    # the conv slice straight into the growing feature buffer.
    conv_nhwc = conv2d.reshape(n, h, w, g)
    out_nhwc = jnp.concatenate([x_nhwc, conv_nhwc], axis=-1)
    return jnp.transpose(out_nhwc, (0, 3, 1, 2))


# --------------------------------------------------------------------------
# Pure-JAX reference (PyTorch training-mode forward semantics)
# --------------------------------------------------------------------------
def _reference_forward(x_nchw, gamma, beta, w_oihw, matmul_dtype=jnp.float32):
    x_nhwc = jnp.transpose(x_nchw, (0, 2, 3, 1)).astype(jnp.float32)
    mean = jnp.mean(x_nhwc, axis=(0, 1, 2), keepdims=True)
    var = jnp.mean((x_nhwc - mean) ** 2, axis=(0, 1, 2), keepdims=True)
    act = (x_nhwc - mean) * lax.rsqrt(var + BN_EPS) * gamma + beta
    act = jnp.maximum(act, 0.0)
    w_hwio = jnp.transpose(w_oihw, (2, 3, 1, 0)).astype(jnp.float32)
    conv = lax.conv_general_dilated(
        act.astype(matmul_dtype), w_hwio.astype(matmul_dtype),
        window_strides=(1, 1), padding="SAME",
        dimension_numbers=("NHWC", "HWIO", "NHWC"),
        preferred_element_type=jnp.float32)
    conv_nchw = jnp.transpose(conv, (0, 3, 1, 2))
    return jnp.concatenate([x_nchw.astype(jnp.float32), conv_nchw], axis=1)


if __name__ == "__main__":
    # Module config: n_channels=4, growth_rate=8; input (N=2, C=4, H=W=16).
    N, C, H, W, G = 2, 4, 16, 16, 8

    key = jax.random.PRNGKey(0)
    kx, kw = jax.random.split(key)

    x = jax.random.normal(kx, (N, C, H, W), dtype=jnp.float32)

    # Deterministic parameter init (PyTorch defaults: BN weight=1, bias=0;
    # conv kaiming-uniform-like bound = 1/sqrt(fan_in)).
    gamma = jnp.ones((C,), jnp.float32)
    beta = jnp.zeros((C,), jnp.float32)
    bound = 1.0 / (C * 3 * 3) ** 0.5
    w = jax.random.uniform(kw, (G, C, 3, 3), jnp.float32, -bound, bound)

    # One-time parameter prep (hoisted out of the forward path).
    gb_lane, big_w = prepare_single_layer_params(gamma, beta, w, W)
    gb_lane, big_w = jax.block_until_ready((gb_lane, big_w))

    fwd = jax.jit(single_layer_forward)
    out = jax.block_until_ready(fwd(x, gb_lane, big_w))
    assert out.shape == (N, C + G, H, W), out.shape

    # Structural check: reference with the same bf16-rounded matmul operands
    # (f32 accumulation) -> differences are accumulation-order only.
    ref_bf16 = jax.block_until_ready(
        _reference_forward(x, gamma, beta, w, matmul_dtype=jnp.bfloat16))
    assert jnp.allclose(out, ref_bf16, atol=2e-3, rtol=2e-3), \
        "mismatch vs bf16-operand reference"

    # Fidelity check vs full-f32 (PyTorch-semantics) reference; tolerance
    # covers bf16 operand rounding introduced by the MXU matmul.
    ref_f32 = jax.block_until_ready(_reference_forward(x, gamma, beta, w))
    assert jnp.allclose(out, ref_f32, atol=6e-2, rtol=6e-2), \
        "mismatch vs f32 reference"

    print("KERNEL_OK")
</pallas_src>

<mosaic_0001>
module attributes {stable_mosaic.version = 11 : i64} {
  func.func @kernel(%arg0: memref<32x64xf32, #tpu.memory_space<vmem>>, %arg1: memref<2x64xf32, #tpu.memory_space<vmem>>, %arg2: memref<192x128xbf16, #tpu.memory_space<vmem>>, %arg3: memref<32x128xf32, #tpu.memory_space<vmem>>) attributes {dimension_semantics = [], scalar_prefetch = 0 : i64, scratch_operands = 0 : i64, tpu.core_type = #tpu.core_type<tc>} {
    %c0 = arith.constant 0 : index
    %c0_0 = arith.constant 0 : index
    %0 = vector.load %arg0[%c0, %c0_0] : memref<32x64xf32, #tpu.memory_space<vmem>>, vector<32x64xf32>
    %cst = arith.constant dense<0.000000e+00> : vector<64xf32>
    %1 = vector.multi_reduction <add>, %0, %cst [0] : vector<32x64xf32> to vector<64xf32>
    %2 = vector.shape_cast %1 : vector<64xf32> to vector<1x64xf32>
    %c4_i32 = arith.constant 4 : i32
    %3 = tpu.dynamic_rotate %2 by %c4_i32 dim 1 : vector<1x64xf32>, i32 -> vector<1x64xf32>
    %4 = arith.addf %2, %3 : vector<1x64xf32>
    %c8_i32 = arith.constant 8 : i32
    %5 = tpu.dynamic_rotate %4 by %c8_i32 dim 1 : vector<1x64xf32>, i32 -> vector<1x64xf32>
    %6 = arith.addf %4, %5 : vector<1x64xf32>
    %c16_i32 = arith.constant 16 : i32
    %7 = tpu.dynamic_rotate %6 by %c16_i32 dim 1 : vector<1x64xf32>, i32 -> vector<1x64xf32>
    %8 = arith.addf %6, %7 : vector<1x64xf32>
    %c32_i32 = arith.constant 32 : i32
    %9 = tpu.dynamic_rotate %8 by %c32_i32 dim 1 : vector<1x64xf32>, i32 -> vector<1x64xf32>
    %10 = arith.addf %8, %9 : vector<1x64xf32>
    %cst_1 = arith.constant 0.001953125 : f32
    %11 = vector.broadcast %cst_1 : f32 to vector<1x64xf32>
    %12 = arith.mulf %10, %11 : vector<1x64xf32>
    %13 = vector.broadcast %12 : vector<1x64xf32> to vector<32x64xf32>
    %14 = arith.subf %0, %13 : vector<32x64xf32>
    %15 = arith.mulf %14, %14 : vector<32x64xf32>
    %cst_2 = arith.constant dense<0.000000e+00> : vector<64xf32>
    %16 = vector.multi_reduction <add>, %15, %cst_2 [0] : vector<32x64xf32> to vector<64xf32>
    %17 = vector.shape_cast %16 : vector<64xf32> to vector<1x64xf32>
    %c4_i32_3 = arith.constant 4 : i32
    %18 = tpu.dynamic_rotate %17 by %c4_i32_3 dim 1 : vector<1x64xf32>, i32 -> vector<1x64xf32>
    %19 = arith.addf %17, %18 : vector<1x64xf32>
    %c8_i32_4 = arith.constant 8 : i32
    %20 = tpu.dynamic_rotate %19 by %c8_i32_4 dim 1 : vector<1x64xf32>, i32 -> vector<1x64xf32>
    %21 = arith.addf %19, %20 : vector<1x64xf32>
    %c16_i32_5 = arith.constant 16 : i32
    %22 = tpu.dynamic_rotate %21 by %c16_i32_5 dim 1 : vector<1x64xf32>, i32 -> vector<1x64xf32>
    %23 = arith.addf %21, %22 : vector<1x64xf32>
    %c32_i32_6 = arith.constant 32 : i32
    %24 = tpu.dynamic_rotate %23 by %c32_i32_6 dim 1 : vector<1x64xf32>, i32 -> vector<1x64xf32>
    %25 = arith.addf %23, %24 : vector<1x64xf32>
    %cst_7 = arith.constant 0.001953125 : f32
    %26 = vector.broadcast %cst_7 : f32 to vector<1x64xf32>
    %27 = arith.mulf %25, %26 : vector<1x64xf32>
    %cst_8 = arith.constant 9.99999974E-6 : f32
    %28 = vector.broadcast %cst_8 : f32 to vector<1x64xf32>
    %29 = arith.addf %27, %28 : vector<1x64xf32>
    %30 = math.rsqrt %29 : vector<1x64xf32>
    %c0_9 = arith.constant 0 : index
    %c0_10 = arith.constant 0 : index
    %31 = vector.load %arg1[%c0_9, %c0_10] : memref<2x64xf32, #tpu.memory_space<vmem>>, vector<1x64xf32>
    %32 = arith.mulf %30, %31 : vector<1x64xf32>
    %33 = vector.broadcast %32 : vector<1x64xf32> to vector<32x64xf32>
    %34 = arith.mulf %14, %33 : vector<32x64xf32>
    %c1 = arith.constant 1 : index
    %c0_11 = arith.constant 0 : index
    %35 = vector.load %arg1[%c1, %c0_11] : memref<2x64xf32, #tpu.memory_space<vmem>>, vector<1x64xf32>
    %36 = vector.broadcast %35 : vector<1x64xf32> to vector<32x64xf32>
    %37 = arith.addf %34, %36 : vector<32x64xf32>
    %cst_12 = arith.constant 0.000000e+00 : f32
    %38 = vector.broadcast %cst_12 : f32 to vector<32x64xf32>
    %39 = arith.maximumf %37, %38 : vector<32x64xf32>
    %40 = tpu.iota {dimensions = array<i32: 0>} : vector<32x1xi32>
    %c16_i32_13 = arith.constant 16 : i32
    %c0_i32 = arith.constant 0 : i32
    %41 = arith.cmpi eq, %c16_i32_13, %c0_i32 : i32
    %c1_i32 = arith.constant 1 : i32
    %42 = arith.select %41, %c1_i32, %c16_i32_13 : i32
    %43 = vector.broadcast %42 : i32 to vector<32x1xi32>
    %44 = arith.remsi %40, %43 : vector<32x1xi32>
    %c0_i32_14 = arith.constant 0 : i32
    %45 = vector.broadcast %c0_i32_14 : i32 to vector<32x1xi32>
    %46 = arith.cmpi ne, %44, %45 : vector<32x1xi32>
    %c0_i32_15 = arith.constant 0 : i32
    %47 = vector.broadcast %c0_i32_15 : i32 to vector<32x1xi32>
    %48 = arith.cmpi slt, %44, %47 : vector<32x1xi32>
    %c0_i32_16 = arith.constant 0 : i32
    %49 = arith.cmpi slt, %42, %c0_i32_16 : i32
    %50 = vector.broadcast %49 : i1 to vector<32x1xi1>
    %51 = vector.broadcast %50 : vector<32x1xi1> to vector<32x1xi1>
    %52 = arith.xori %48, %51 : vector<32x1xi1>
    %53 = arith.andi %52, %46 : vector<32x1xi1>
    %54 = vector.broadcast %42 : i32 to vector<32x1xi32>
    %55 = arith.addi %44, %54 : vector<32x1xi32>
    %56 = arith.select %53, %55, %44 : vector<32x1xi1>, vector<32x1xi32>
    %c0_i32_17 = arith.constant 0 : i32
    %57 = vector.broadcast %c0_i32_17 : i32 to vector<32x1xi32>
    %58 = arith.cmpi eq, %56, %57 : vector<32x1xi32>
    %c1_i32_18 = arith.constant 1 : i32
    %59 = tpu.dynamic_rotate %39 by %c1_i32_18 dim 0 : vector<32x64xf32>, i32 -> vector<32x64xf32>
    %cst_19 = arith.constant 0.000000e+00 : f32
    %60 = vector.shape_cast %58 : vector<32x1xi1> to vector<32x1xi1>
    %61 = vector.broadcast %60 : vector<32x1xi1> to vector<32x64xi1>
    %62 = vector.broadcast %cst_19 : f32 to vector<32x64xf32>
    %63 = arith.select %61, %62, %59 : vector<32x64xi1>, vector<32x64xf32>
    %c15_i32 = arith.constant 15 : i32
    %64 = vector.broadcast %c15_i32 : i32 to vector<32x1xi32>
    %65 = arith.cmpi eq, %56, %64 : vector<32x1xi32>
    %c31_i32 = arith.constant 31 : i32
    %66 = tpu.dynamic_rotate %39 by %c31_i32 dim 0 : vector<32x64xf32>, i32 -> vector<32x64xf32>
    %cst_20 = arith.constant 0.000000e+00 : f32
    %67 = vector.shape_cast %65 : vector<32x1xi1> to vector<32x1xi1>
    %68 = vector.broadcast %67 : vector<32x1xi1> to vector<32x64xi1>
    %69 = vector.broadcast %cst_20 : f32 to vector<32x64xf32>
    %70 = arith.select %68, %69, %66 : vector<32x64xi1>, vector<32x64xf32>
    %71 = tpu.concatenate %63, %39, %70 in 1 : vector<32x64xf32>, vector<32x64xf32>, vector<32x64xf32> -> vector<32x192xf32>
    %72 = arith.truncf %71 : vector<32x192xf32> to vector<32x192xbf16>
    %c0_21 = arith.constant 0 : index
    %c0_22 = arith.constant 0 : index
    %73 = vector.load %arg2[%c0_21, %c0_22] : memref<192x128xbf16, #tpu.memory_space<vmem>>, vector<192x128xbf16>
    %cst_23 = arith.constant dense<0.000000e+00> : vector<32x128xf32>
    %74 = tpu.matmul %72, %73, %cst_23 {dimension_numbers = #tpu.dot_dimension_numbers<[1], [0], [0], [1], [0, 0, 1, 1], [], []>} : vector<32x192xbf16>, vector<192x128xbf16>, vector<32x128xf32> -> vector<32x128xf32>
    %c0_24 = arith.constant 0 : index
    %c0_25 = arith.constant 0 : index
    %75 = vector.load %arg3[%c0_24, %c0_25] : memref<32x128xf32, #tpu.memory_space<vmem>>, vector<32x128xf32>
    tpu.vector_store %arg3[%c0_24, %c0_25], %74 {strides = array<i32>} : memref<32x128xf32, #tpu.memory_space<vmem>>, vector<32x128xf32>,
    return
  }
}

</mosaic_0001>

<llo_original>
// kernel: single_layer_forward.1
$region0: #{single_layer_forward.1}
  #allocation0 [shape = 'u32[]', space=smem, size = 0x4, offset = 0x4, fixed_abs, tag = 'smem constant byte address 0x4 - core index']
  #allocation1 [shape = 'u32[144,128]{1,0:T(1,128)}', space=vmem, size = 0x12000, scoped, tag = 'internal scratch']
  %s0 = inlined_call_operand.vmem [shape: f32[32,64], index: 0, kind: input, shape index: {}]
  %s1 = inlined_call_operand.vmem [shape: f32[2,64], index: 1, kind: input, shape index: {}]
  %s2 = inlined_call_operand.vmem [shape: bf16[192,128], index: 2, kind: input, shape index: {}]
  %s3 = inlined_call_operand.vmem [shape: f32[32,128], index: 3, kind: output, shape index: {}]
  %s4 = sld [smem:[#allocation0]]
  $region22: #{single_layer_forward.1} parent=0
    _
  %s6 = ssub.s32 1, %s4
  %s7 = scalar_select 0, %s6, %s4
  // Predicated region
  $region2: #{single_layer_forward.1} parent=0 // pred_check
    _
  $region3: #{single_layer_forward.1} parent=0 // pred_check_branch
    %9 = sbr.rel (0) target = $region5
  $region4: #{single_layer_forward.1} parent=0 // pred_region
    _
  $region5: #{single_layer_forward.1} parent=0 // pred_fallthru
    _
  // Predicated region
  $region6: #{single_layer_forward.1} parent=0 // pred_check
    _
  $region7: #{single_layer_forward.1} parent=0 // pred_check_branch
    %11 = sbr.rel (0) target = $region9
  $region8: #{single_layer_forward.1} parent=0 // pred_region
    _
  $region9: #{single_layer_forward.1} parent=0 // pred_fallthru
    _
  // Predicated region
  $region10: #{single_layer_forward.1} parent=0 // pred_check
    _
  $region11: #{single_layer_forward.1} parent=0 // pred_check_branch
    %13 = sbr.rel (0) target = $region13
  $region12: #{single_layer_forward.1} parent=0 // pred_region
    _
  $region13: #{single_layer_forward.1} parent=0 // pred_fallthru
    _
  %v15 = vld [vmem:[%s0] sm:$0xff]
  %v16 = vld [vmem:[%s0 + $0x8] sm:$0xff]
  %v17 = vld [vmem:[%s0 + $0x10] sm:$0xff]
  %v18 = vld [vmem:[%s0 + $0x18] sm:$0xff]
  %vm19 = vcmask 523264
  %v20 = vsel %vm19, %v15, 0.0
  %v21 = vsel %vm19, %v16, 0.0
  %v22 = vadd.f32 %v20, %v21
  %v23 = vsel %vm19, %v17, 0.0
  %v24 = vadd.f32 %v22, %v23
  %v25 = vsel %vm19, %v18, 0.0
  %v26 = vadd.f32 %v24, %v25
  %v27 = vrot.slane %v26, 4
  %v28 = vadd.f32 %v26, %v27
  %v29 = vrot.slane %v28, 2
  %v30 = vadd.f32 %v28, %v29
  %v31 = vrot.slane %v30, 1
  %v32 = vadd.f32 %v30, %v31
  %vm33 = vcmask 1048064
  %34 = vrot.lane.b32.xlu0 %v32, 64
  %v35 = vpop.permute.xlu0 %34
  %v36 = vsel %vm33, %v35, %v32
  %37 = vrot.lane.b32.xlu0 %v36, 64
  %v38 = vpop.permute.xlu0 %37
  %v39 = vsel %vm33, %v38, %v32
  %41 = vrot.lane.b32.xlu0 %v39, 68
  %v42 = vpop.permute.xlu0 %41
  %v44 = vadd.f32 %v32, %v42
  %45 = vrot.lane.b32.xlu0 %v44, 64
  %v46 = vpop.permute.xlu0 %45
  %v47 = vsel %vm33, %v46, %v44
  %48 = vrot.lane.b32.xlu0 %v47, 64
  %v49 = vpop.permute.xlu0 %48
  %v50 = vsel %vm33, %v49, %v44
  %52 = vrot.lane.b32.xlu0 %v50, 72
  %v53 = vpop.permute.xlu0 %52
  %v55 = vadd.f32 %v44, %v53
  %56 = vrot.lane.b32.xlu0 %v55, 64
  %v57 = vpop.permute.xlu0 %56
  %v58 = vsel %vm33, %v57, %v55
  %59 = vrot.lane.b32.xlu0 %v58, 64
  %v60 = vpop.permute.xlu0 %59
  %v61 = vsel %vm33, %v60, %v55
  %63 = vrot.lane.b32.xlu0 %v61, 80
  %v64 = vpop.permute.xlu0 %63
  %v66 = vadd.f32 %v55, %v64
  %67 = vrot.lane.b32.xlu0 %v66, 64
  %v68 = vpop.permute.xlu0 %67
  %v69 = vsel %vm33, %v68, %v66
  %70 = vrot.lane.b32.xlu0 %v69, 64
  %v71 = vpop.permute.xlu0 %70
  %v72 = vsel %vm33, %v71, %v66
  %74 = vrot.lane.b32.xlu0 %v72, 96
  %v75 = vpop.permute.xlu0 %74
  %v77 = vadd.f32 %v66, %v75
  %v78 = vmul.f32 %v77, 0.001953125
  %v79 = vlaneseq
  %v80 = vshrl.u32 %v79, 7
  %v81 = vsub.s32 0, %v80
  %v82 = vrot.slane %v78, %v81
  %v83 = vsub.f32 %v15, %v82
  %v84 = vsub.f32 %v16, %v82
  %v85 = vsub.f32 %v17, %v82
  %v86 = vsub.f32 %v18, %v82
  %v87 = vmul.f32 %v83, %v83
  %v88 = vmul.f32 %v84, %v84
  %v89 = vmul.f32 %v85, %v85
  %v90 = vmul.f32 %v86, %v86
  %v91 = vsel %vm19, %v87, 0.0
  %v92 = vsel %vm19, %v88, 0.0
  %v93 = vadd.f32 %v91, %v92
  %v94 = vsel %vm19, %v89, 0.0
  %v95 = vadd.f32 %v93, %v94
  %v96 = vsel %vm19, %v90, 0.0
  %v97 = vadd.f32 %v95, %v96
  %v98 = vrot.slane %v97, 4
  %v99 = vadd.f32 %v97, %v98
  %v100 = vrot.slane %v99, 2
  %v101 = vadd.f32 %v99, %v100
  %v102 = vrot.slane %v101, 1
  %v103 = vadd.f32 %v101, %v102
  %104 = vrot.lane.b32.xlu0 %v103, 64
  %v105 = vpop.permute.xlu0 %104
  %v106 = vsel %vm33, %v105, %v103
  %107 = vrot.lane.b32.xlu0 %v106, 64
  %v108 = vpop.permute.xlu0 %107
  %v109 = vsel %vm33, %v108, %v103
  %111 = vrot.lane.b32.xlu0 %v109, 68
  %v112 = vpop.permute.xlu0 %111
  %v114 = vadd.f32 %v103, %v112
  %115 = vrot.lane.b32.xlu0 %v114, 64
  %v116 = vpop.permute.xlu0 %115
  %v117 = vsel %vm33, %v116, %v114
  %118 = vrot.lane.b32.xlu0 %v117, 64
  %v119 = vpop.permute.xlu0 %118
  %v120 = vsel %vm33, %v119, %v114
  %122 = vrot.lane.b32.xlu0 %v120, 72
  %v123 = vpop.permute.xlu0 %122
  %v125 = vadd.f32 %v114, %v123
  %126 = vrot.lane.b32.xlu0 %v125, 64
  %v127 = vpop.permute.xlu0 %126
  %v128 = vsel %vm33, %v127, %v125
  %129 = vrot.lane.b32.xlu0 %v128, 64
  %v130 = vpop.permute.xlu0 %129
  %v131 = vsel %vm33, %v130, %v125
  %133 = vrot.lane.b32.xlu0 %v131, 80
  %v134 = vpop.permute.xlu0 %133
  %v136 = vadd.f32 %v125, %v134
  %137 = vrot.lane.b32.xlu0 %v136, 64
  %v138 = vpop.permute.xlu0 %137
  %v139 = vsel %vm33, %v138, %v136
  %140 = vrot.lane.b32.xlu0 %v139, 64
  %v141 = vpop.permute.xlu0 %140
  %v142 = vsel %vm33, %v141, %v136
  %144 = vrot.lane.b32.xlu0 %v142, 96
  %v145 = vpop.permute.xlu0 %144
  %v147 = vadd.f32 %v136, %v145
  %v148 = vmul.f32 %v147, 0.001953125
  %v149 = vadd.f32 %v148, 1e-05
  %v150 = vrsqrt.pop %v149
  %v151 = vld [vmem:[%s1] sm:$0x1]
  %v152 = vmul.f32 %v150, %v151
  %v153 = vlaneseq
  %v154 = vshrl.u32 %v153, 7
  %v155 = vsub.s32 0, %v154
  %v156 = vrot.slane %v152, %v155
  %v157 = vmul.f32 %v83, %v156
  %v158 = vmul.f32 %v84, %v156
  %v159 = vmul.f32 %v85, %v156
  %v160 = vmul.f32 %v86, %v156
  %v161 = vld [vmem:[%s1 + $0x1] sm:$0x1]
  %v162 = vlaneseq
  %v163 = vshrl.u32 %v162, 7
  %v164 = vsub.s32 0, %v163
  %v165 = vrot.slane %v161, %v164
  %v166 = vadd.f32 %v157, %v165
  %v167 = vadd.f32 %v158, %v165
  %v168 = vadd.f32 %v159, %v165
  %v169 = vadd.f32 %v160, %v165
  %v170 = vmax.f32 %v166, 0.0
  %v171 = vmax.f32 %v167, 0.0
  %v172 = vmax.f32 %v168, 0.0
  %v173 = vmax.f32 %v169, 0.0
  %v174 = vlaneseq
  %v175 = vshrl.u32 %v174, 7
  %v176 = vadd.s32 %v175, 8
  %v177 = vadd.s32 %v175, 16
  %v178 = vadd.s32 %v175, 24
  %vm179 = vcmp.lt.s32.totalorder %v175, 0
  %v180 = vsub.s32 0, %v175
  %v181 = vsel %vm179, %v180, %v175
  %v182 = vshrl.u32 %v181, 4
  %v183 = vand.u32 %v181, 15
  %v184 = vsub.s32 0, %v183
  %v185 = vsel %vm179, %v184, %v183
  %vm186 = vcmp.lt.s32.totalorder %v176, 0
  %v187 = vsub.s32 0, %v176
  %v188 = vsel %vm186, %v187, %v176
  %v189 = vshrl.u32 %v188, 4
  %v190 = vand.u32 %v188, 15
  %v191 = vsub.s32 0, %v190
  %v192 = vsel %vm186, %v191, %v190
  %vm193 = vcmp.lt.s32.totalorder %v177, 0
  %v194 = vsub.s32 0, %v177
  %v195 = vsel %vm193, %v194, %v177
  %v196 = vshrl.u32 %v195, 4
  %v197 = vand.u32 %v195, 15
  %v198 = vsub.s32 0, %v197
  %v199 = vsel %vm193, %v198, %v197
  %vm200 = vcmp.lt.s32.totalorder %v178, 0
  %v201 = vsub.s32 0, %v178
  %v202 = vsel %vm200, %v201, %v178
  %v203 = vshrl.u32 %v202, 4
  %v204 = vand.u32 %v202, 15
  %v205 = vsub.s32 0, %v204
  %v206 = vsel %vm200, %v205, %v204
  %vm207 = vcmp.ne.s32.totalorder %v185, 0
  %vm208 = vcmp.ne.s32.totalorder %v192, 0
  %vm209 = vcmp.ne.s32.totalorder %v199, 0
  %vm210 = vcmp.ne.s32.totalorder %v206, 0
  %vm211 = vcmp.lt.s32.totalorder %v185, 0
  %vm212 = vcmp.lt.s32.totalorder %v192, 0
  %vm213 = vcmp.lt.s32.totalorder %v199, 0
  %vm214 = vcmp.lt.s32.totalorder %v206, 0
  %vm215 = vmand %vm211, %vm207
  %vm216 = vmand %vm212, %vm208
  %vm217 = vmand %vm213, %vm209
  %vm218 = vmand %vm214, %vm210
  %v219 = vadd.s32 %v185, 16
  %v220 = vadd.s32 %v192, 16
  %v221 = vadd.s32 %v199, 16
  %v222 = vadd.s32 %v206, 16
  %v223 = vsel %vm215, %v219, %v185
  %v224 = vsel %vm216, %v220, %v192
  %v225 = vsel %vm217, %v221, %v199
  %v226 = vsel %vm218, %v222, %v206
  %vm227 = vcmp.eq.s32.totalorder %v223, 0
  %vm228 = vcmp.eq.s32.totalorder %v224, 0
  %vm229 = vcmp.eq.s32.totalorder %v225, 0
  %vm230 = vcmp.eq.s32.totalorder %v226, 0
  %v231 = vrot.slane %v170, 7
  %v232 = vrot.slane %v171, 7
  %v233 = vrot.slane %v172, 7
  %v234 = vrot.slane %v173, 7
  %vm235 = vcmp.lt.s32.totalorder %v175, 1
  %v236 = vsel %vm235, %v233, %v234
  %v237 = vsel %vm235, %v232, %v233
  %v238 = vsel %vm235, %v231, %v232
  %v239 = vsel %vm235, %v234, %v231
  %v240 = vsel %vm227, 1, 0
  %v241 = vsel %vm228, 1, 0
  %v242 = vsel %vm229, 1, 0
  %v243 = vsel %vm230, 1, 0
  %vm244 = vcmp.eq.s32.totalorder %v240, 1
  %vm245 = vcmp.eq.s32.totalorder %v241, 1
  %vm246 = vcmp.eq.s32.totalorder %v242, 1
  %vm247 = vcmp.eq.s32.totalorder %v243, 1
  %v248 = vsel %vm244, 0.0, %v239
  %v249 = vsel %vm245, 0.0, %v238
  %v250 = vsel %vm246, 0.0, %v237
  %v251 = vsel %vm247, 0.0, %v236
  %vm252 = vcmp.eq.s32.totalorder %v223, 15
  %vm253 = vcmp.eq.s32.totalorder %v224, 15
  %vm254 = vcmp.eq.s32.totalorder %v225, 15
  %vm255 = vcmp.eq.s32.totalorder %v226, 15
  %v256 = vrot.slane %v170, 1
  %v257 = vrot.slane %v171, 1
  %v258 = vrot.slane %v172, 1
  %v259 = vrot.slane %v173, 1
  %vm260 = vcmp.lt.s32.totalorder %v175, 7
  %v261 = vsel %vm260, %v258, %v259
  %v262 = vsel %vm260, %v257, %v258
  %v263 = vsel %vm260, %v256, %v257
  %v264 = vsel %vm260, %v259, %v256
  %v265 = vsel %vm252, 1, 0
  %v266 = vsel %vm253, 1, 0
  %v267 = vsel %vm254, 1, 0
  %v268 = vsel %vm255, 1, 0
  %vm269 = vcmp.eq.s32.totalorder %v265, 1
  %vm270 = vcmp.eq.s32.totalorder %v266, 1
  %vm271 = vcmp.eq.s32.totalorder %v267, 1
  %vm272 = vcmp.eq.s32.totalorder %v268, 1
  %v273 = vsel %vm269, 0.0, %v263
  %v274 = vsel %vm270, 0.0, %v262
  %v275 = vsel %vm271, 0.0, %v261
  %v276 = vsel %vm272, 0.0, %v264
  %281 = vrot.lane.b32.xlu0 %v170, 64
  %v282 = vpop.permute.xlu0 %281
  %283 = vrot.lane.b32.xlu0 %v171, 64
  %v284 = vpop.permute.xlu0 %283
  %285 = vrot.lane.b32.xlu0 %v172, 64
  %v286 = vpop.permute.xlu0 %285
  %287 = vrot.lane.b32.xlu0 %v173, 64
  %v288 = vpop.permute.xlu0 %287
  %v293 = vsel %vm19, %v248, %v282
  %v294 = vsel %vm19, %v249, %v284
  %v295 = vsel %vm19, %v250, %v286
  %v296 = vsel %vm19, %v251, %v288
  %v297 = vpack.c.bf16 %v294, %v293
  %v298 = vpack.c.bf16 %v274, %v273
  %v299 = vpack.c.bf16 %v296, %v295
  %v300 = vpack.c.bf16 %v276, %v275
  %v301 = vld [vmem:[%s2] sm:$0xf]
  %v302 = vld [vmem:[%s2 + $0x4] sm:$0xf]
  %v303 = vld [vmem:[%s2 + $0x8] sm:$0xf]
  %v304 = vld [vmem:[%s2 + $0xc] sm:$0xf]
  %v305 = vld [vmem:[%s2 + $0x10] sm:$0xf]
  %v306 = vld [vmem:[%s2 + $0x14] sm:$0xf]
  %v307 = vld [vmem:[%s2 + $0x18] sm:$0xf]
  %v308 = vld [vmem:[%s2 + $0x1c] sm:$0xf]
  %v309 = vld [vmem:[%s2 + $0x20] sm:$0xf]
  %v310 = vld [vmem:[%s2 + $0x24] sm:$0xf]
  %v311 = vld [vmem:[%s2 + $0x28] sm:$0xf]
  %v312 = vld [vmem:[%s2 + $0x2c] sm:$0xf]
  %v313 = vld [vmem:[%s2 + $0x30] sm:$0xf]
  %v314 = vld [vmem:[%s2 + $0x34] sm:$0xf]
  %v315 = vld [vmem:[%s2 + $0x38] sm:$0xf]
  %v316 = vld [vmem:[%s2 + $0x3c] sm:$0xf]
  %v317 = vld [vmem:[%s2 + $0x40] sm:$0xf]
  %v318 = vld [vmem:[%s2 + $0x44] sm:$0xf]
  %v319 = vld [vmem:[%s2 + $0x48] sm:$0xf]
  %v320 = vld [vmem:[%s2 + $0x4c] sm:$0xf]
  %v321 = vld [vmem:[%s2 + $0x50] sm:$0xf]
  %v322 = vld [vmem:[%s2 + $0x54] sm:$0xf]
  %v323 = vld [vmem:[%s2 + $0x58] sm:$0xf]
  %v324 = vld [vmem:[%s2 + $0x5c] sm:$0xf]
  %v349 = vunpack.c.l.b16 %v301
  %v350 = vunpack.c.l.b16 %v302
  %v351 = vunpack.c.l.b16 %v303
  %v352 = vunpack.c.l.b16 %v304
  %v353 = vunpack.c.l.b16 %v305
  %v354 = vunpack.c.l.b16 %v306
  %v355 = vunpack.c.l.b16 %v307
  %v356 = vunpack.c.l.b16 %v308
  %v357 = vunpack.c.l.b16 %v309
  %v358 = vunpack.c.l.b16 %v310
  %v359 = vunpack.c.l.b16 %v311
  %v360 = vunpack.c.l.b16 %v312
  %v361 = vunpack.c.l.b16 %v313
  %v362 = vunpack.c.l.b16 %v314
  %v363 = vunpack.c.l.b16 %v315
  %v364 = vunpack.c.l.b16 %v316
  %v365 = vunpack.c.l.b16 %v317
  %v366 = vunpack.c.l.b16 %v318
  %v367 = vunpack.c.l.b16 %v319
  %v368 = vunpack.c.l.b16 %v320
  %v369 = vunpack.c.l.b16 %v321
  %v370 = vunpack.c.l.b16 %v322
  %v371 = vunpack.c.l.b16 %v323
  %v372 = vunpack.c.l.b16 %v324
  %v373 = vpack.c.b16 %v350, %v349
  %v374 = vpack.c.b16 %v352, %v351
  %v375 = vpack.c.b16 %v354, %v353
  %v376 = vpack.c.b16 %v356, %v355
  %v377 = vpack.c.b16 %v358, %v357
  %v378 = vpack.c.b16 %v360, %v359
  %v379 = vpack.c.b16 %v362, %v361
  %v380 = vpack.c.b16 %v364, %v363
  %v381 = vpack.c.b16 %v366, %v365
  %v382 = vpack.c.b16 %v368, %v367
  %v383 = vpack.c.b16 %v370, %v369
  %v384 = vpack.c.b16 %v372, %v371
  %v398 = vsel %vm19, %v298, 0
  %v401 = vsel %vm19, %v300, 0
  %403 = vmatprep.subr.bf16.mxu0 0
  %404 = vmatpush1.bf16.msra.mxu0 %v380
  %405 = vmatprep.subr.bf16.mxu0 0
  %406 = vmatpush1.bf16.msra.mxu0 %v379
  %407 = vmatprep.subr.bf16.mxu0 0
  %408 = vmatpush1.bf16.msra.mxu0 %v378
  %409 = vmatprep.subr.bf16.mxu0 0
  %410 = vmatpush1.bf16.msra.mxu0 %v377
  %411 = vmatprep.subr.bf16.mxu0 0
  %412 = vmatpush1.bf16.msra.mxu0 %v376
  %413 = vmatprep.subr.bf16.mxu0 0
  %414 = vmatpush1.bf16.msra.mxu0 %v375
  %415 = vmatprep.subr.bf16.mxu0 0
  %416 = vmatpush1.bf16.msra.mxu0 %v374
  %417 = vmatprep.subr.bf16.mxu0 0
  %418 = vmatpush1.bf16.msra.mxu0 %v373
  %419 = vmatprep.subr.bf16.mxu0 0
  %420 = vmatpush2.bf16.msra.mxu0 0
  %421 = vmatprep.subr.bf16.mxu0 0
  %422 = vmatpush2.bf16.msra.mxu0 0
  %423 = vmatprep.subr.bf16.mxu0 0
  %424 = vmatpush2.bf16.msra.mxu0 0
  %425 = vmatprep.subr.bf16.mxu0 0
  %426 = vmatpush2.bf16.msra.mxu0 0
  %427 = vmatprep.subr.bf16.mxu0 0
  %428 = vmatpush2.bf16.msra.mxu0 %v384
  %429 = vmatprep.subr.bf16.mxu0 0
  %430 = vmatpush2.bf16.msra.mxu0 %v383
  %431 = vmatprep.subr.bf16.mxu0 0
  %432 = vmatpush2.bf16.msra.mxu0 %v382
  %433 = vmatprep.subr.bf16.mxu0 0
  %434 = vmatpush2.bf16.msra.mxu0 %v381
  %435 = vmatprep.mubr.bf16.mxu0 %v398
  %436 = vmatmul.mubr.bf16.gmra.mxu0 %v297
  %v437 = vpop.f32.mrf.mxu0
  %v438 = vadd.f32 0.0, %v437
  %v439 = vpop.f32.mrf.mxu0
  %v440 = vpop.f32.mrf.mxu0
  %v441 = vadd.f32 0.0, %v440
  %v442 = vpop.f32.mrf.mxu0
  %443 = vmatprep.mubr.bf16.mxu0 %v401
  %444 = vmatmul.mubr.bf16.gmra.mxu0 %v299
  %v445 = vpop.f32.mrf.mxu0
  %v446 = vadd.f32 0.0, %v445
  %v447 = vpop.f32.mrf.mxu0
  %v448 = vpop.f32.mrf.mxu0
  %v449 = vadd.f32 0.0, %v448
  %v450 = vpop.f32.mrf.mxu0
  %451 = vdwg.mxu0
  %452 = vst [vmem:[%s3] sm:$0xff] %v438
  %453 = vst [vmem:[%s3 + $0x8] sm:$0xff] %v441
  %454 = vst [vmem:[%s3 + $0x10] sm:$0xff] %v446
  %455 = vst [vmem:[%s3 + $0x18] sm:$0xff] %v449
  // Predicated region
  $region14: #{single_layer_forward.1} parent=0 // pred_check
    _
  $region15: #{single_layer_forward.1} parent=0 // pred_check_branch
    %457 = sbr.rel (0) target = $region17
  $region16: #{single_layer_forward.1} parent=0 // pred_region
    _
  $region17: #{single_layer_forward.1} parent=0 // pred_fallthru
    _
  // Predicated region
  $region18: #{single_layer_forward.1} parent=0 // pred_check
    _
  $region19: #{single_layer_forward.1} parent=0 // pred_check_branch
    %459 = sbr.rel (0) target = $region21
  $region20: #{single_layer_forward.1} parent=0 // pred_region
    _
  $region21: #{single_layer_forward.1} parent=0 // pred_fallthru
    _

</llo_original>
